<compile_context>
chip_gen: v6e
topology: v6e:2x2x1
jax: 0.10.0
libtpu: 0.0.40
codegen_flags: <defaults>
</compile_context>

<pallas_src>
import math

import jax
import jax.numpy as jnp
import numpy as np
from jax.experimental import pallas as pl
from jax.experimental.pallas import tpu as pltpu

# Make the plain-JAX reference use full-precision matmuls so it matches the kernel.
jax.config.update("jax_default_matmul_precision", "highest")


# -----------------------------------------------------------------------------
# Kernel: one batch tile per grid step.
#   m_ref:     (TB, L, D)  inputs for TB batch elements (D on lanes)
#   w_ref:     (1, D)      nn.Linear(D, 1, bias=False).weight
#   pool_ref:  (TB, D)     attention-pooled vectors
#   alpha_ref: (TB, L)     attention weights (softmax over L)
# -----------------------------------------------------------------------------
def _simple_attention_kernel(m_ref, w_ref, pool_ref, alpha_ref):
    m = m_ref[...]                                   # (TB, L, D) f32
    w = w_ref[...]                                   # (1, D)

    # scale[b, l] = <M[b, l, :], w>  -- VPU multiply + XLU lane reduction.
    # (A per-(b) MXU matvec here would use only 1 of 128/256 MXU rows.)
    s = jnp.sum(m * w, axis=-1)                      # (TB, L)

    # Softmax over the sequence axis (dim=0 of the original (L, B, 1) tensor).
    s_max = jnp.max(s, axis=-1, keepdims=True)       # (TB, 1)
    e = jnp.exp(s - s_max)                           # (TB, L)
    denom = jnp.sum(e, axis=-1, keepdims=True)       # (TB, 1)
    alpha = e * pl.reciprocal(denom)                 # (TB, L)   exact recip

    # Single lane-dense store of the attention weights.
    alpha_ref[...] = alpha

    # attn_pool[b, :] = sum_l alpha[b, l] * M[b, l, :]
    # Broadcast multiply + sublane-axis reduction; no per-batch MXU matmuls,
    # single lane-dense store of the pooled output.
    pool_ref[...] = jnp.sum(alpha[:, :, None] * m, axis=1)   # (TB, D)


# -----------------------------------------------------------------------------
# Wrapper: matches the PyTorch SimpleAttention.forward signature/semantics.
#   w: (1, D)  (nn.Linear(input_dim, 1, bias=False).weight)
#   M: (L, B, D)
# Returns (attn_pool (B, D), alpha (B, 1, L)).
# -----------------------------------------------------------------------------
def simple_attention_pallas(w, M, *, block_b=None):
    L, B, D = M.shape
    assert w.shape == (1, D)

    # Layout plumbing in the XLA wrapper: batch-major, D on the lane axis.
    m_bld = jnp.transpose(M, (1, 0, 2)).astype(jnp.float32)   # (B, L, D)
    w_f32 = w.astype(jnp.float32)

    # Batch tile: multiple of 8 (sublane quantum) or the full batch extent.
    if block_b is None:
        block_b = B if B < 8 else 8
    if B % block_b != 0:
        block_b = B                       # fall back to a single full block
    grid = (B // block_b,)

    # VMEM budget per generation: double-buffered input/output blocks + weight.
    elem = 4  # f32
    block_bytes = (block_b * L * D        # M tile
                   + D                    # weight
                   + block_b * D          # pool tile
                   + block_b * L) * elem  # alpha tile
    vmem_limit = int(min(max(4 * block_bytes + (1 << 20), 16 << 20), 48 << 20))

    pool, alpha = pl.pallas_call(
        _simple_attention_kernel,
        grid=grid,
        in_specs=[
            pl.BlockSpec((block_b, L, D), lambda i: (i, 0, 0)),   # M tile
            pl.BlockSpec((1, D), lambda i: (0, 0)),               # weight (broadcast)
        ],
        out_specs=(
            pl.BlockSpec((block_b, D), lambda i: (i, 0)),         # attn_pool tile
            pl.BlockSpec((block_b, L), lambda i: (i, 0)),         # alpha tile
        ),
        out_shape=(
            jax.ShapeDtypeStruct((B, D), jnp.float32),
            jax.ShapeDtypeStruct((B, L), jnp.float32),
        ),
        compiler_params=pltpu.CompilerParams(
            dimension_semantics=("parallel",),     # batch tiles are independent
            vmem_limit_bytes=vmem_limit,
        ),
    )(m_bld, w_f32)

    return pool, alpha.reshape(B, 1, L)


# Pure-JAX reference mirroring the PyTorch forward exactly.
def simple_attention_ref(w, M):
    M = M.astype(jnp.float32)
    w = w.astype(jnp.float32)
    scale = M @ w.T                                   # (L, B, 1)
    alpha = jax.nn.softmax(scale, axis=0)             # softmax over seq (dim=0)
    alpha_p = jnp.transpose(alpha, (1, 2, 0))         # (B, 1, L)
    m_bld = jnp.transpose(M, (1, 0, 2))               # (B, L, D)
    attn_pool = jnp.matmul(alpha_p, m_bld)[:, 0, :]   # (B, D)
    return attn_pool, alpha_p


if __name__ == "__main__":
    key = jax.random.PRNGKey(0)
    kw, km1, km2 = jax.random.split(key, 3)

    # Case 1: multi-step grid (B=16 -> two batch tiles of 8).
    L, B, D = 8, 16, 32
    bound = 1.0 / math.sqrt(D)
    w = jax.random.uniform(kw, (1, D), jnp.float32, -bound, bound)
    M = jax.random.normal(km1, (L, B, D), jnp.float32)

    pool, alpha = simple_attention_pallas(w, M)
    pool = jax.block_until_ready(pool)
    alpha = jax.block_until_ready(alpha)

    pool_ref, alpha_ref = simple_attention_ref(w, M)
    np.testing.assert_allclose(np.asarray(pool), np.asarray(pool_ref),
                               rtol=1e-5, atol=1e-5)
    np.testing.assert_allclose(np.asarray(alpha), np.asarray(alpha_ref),
                               rtol=1e-5, atol=1e-5)

    # Case 2: tiny batch (single full-extent block, grid of 1).
    L2, B2, D2 = 8, 2, 32
    M2 = jax.random.normal(km2, (L2, B2, D2), jnp.float32)
    pool2, alpha2 = simple_attention_pallas(w, M2)
    pool2 = jax.block_until_ready(pool2)
    alpha2 = jax.block_until_ready(alpha2)

    pool2_ref, alpha2_ref = simple_attention_ref(w, M2)
    np.testing.assert_allclose(np.asarray(pool2), np.asarray(pool2_ref),
                               rtol=1e-5, atol=1e-5)
    np.testing.assert_allclose(np.asarray(alpha2), np.asarray(alpha2_ref),
                               rtol=1e-5, atol=1e-5)

    print("KERNEL_OK")
</pallas_src>

<mosaic_0001>
module attributes {stable_mosaic.version = 11 : i64} {
  func.func @_simple_attention_kernel(%arg0: i32, %arg1: memref<8x8x32xf32, #tpu.memory_space<vmem>>, %arg2: memref<1x32xf32, #tpu.memory_space<vmem>>, %arg3: memref<8x32xf32, #tpu.memory_space<vmem>>, %arg4: memref<8x8xf32, #tpu.memory_space<vmem>>) attributes {dimension_semantics = [#tpu.dimension_semantics<parallel>], iteration_bounds = array<i64: 2>, scalar_prefetch = 0 : i64, scratch_operands = 0 : i64, tpu.core_type = #tpu.core_type<tc>, window_params = [{transform_indices = @transform_0, window_bounds = array<i64: 8, 8, 32>}, {pipeline_mode = #tpu.pipeline_mode<synchronous>, transform_indices = @transform_1, window_bounds = array<i64: 1, 32>}, {transform_indices = @transform_2, window_bounds = array<i64: 8, 32>}, {transform_indices = @transform_3, window_bounds = array<i64: 8, 8>}]} {
    %c0 = arith.constant 0 : index
    %c0_0 = arith.constant 0 : index
    %c0_1 = arith.constant 0 : index
    %0 = vector.load %arg1[%c0, %c0_0, %c0_1] : memref<8x8x32xf32, #tpu.memory_space<vmem>>, vector<8x8x32xf32>
    %c0_2 = arith.constant 0 : index
    %c0_3 = arith.constant 0 : index
    %1 = vector.load %arg2[%c0_2, %c0_3] : memref<1x32xf32, #tpu.memory_space<vmem>>, vector<1x32xf32>
    %2 = vector.shape_cast %1 : vector<1x32xf32> to vector<1x1x32xf32>
    %3 = vector.broadcast %2 : vector<1x1x32xf32> to vector<8x8x32xf32>
    %4 = arith.mulf %0, %3 : vector<8x8x32xf32>
    %cst = arith.constant dense<0.000000e+00> : vector<8x8xf32>
    %5 = vector.multi_reduction <add>, %4, %cst [2] : vector<8x8x32xf32> to vector<8x8xf32>
    %cst_4 = arith.constant dense<0xFF800000> : vector<8xf32>
    %6 = vector.multi_reduction <maximumf>, %5, %cst_4 [1] : vector<8x8xf32> to vector<8xf32>
    %7 = vector.shape_cast %6 : vector<8xf32> to vector<8x1xf32>
    %8 = vector.broadcast %7 : vector<8x1xf32> to vector<8x8xf32>
    %9 = arith.subf %5, %8 : vector<8x8xf32>
    %10 = math.exp %9 : vector<8x8xf32>
    %cst_5 = arith.constant dense<0.000000e+00> : vector<8xf32>
    %11 = vector.multi_reduction <add>, %10, %cst_5 [1] : vector<8x8xf32> to vector<8xf32>
    %12 = vector.shape_cast %11 : vector<8xf32> to vector<8x1xf32>
    %13 = tpu.reciprocal %12 : vector<8x1xf32> -> vector<8x1xf32>
    %14 = vector.broadcast %13 : vector<8x1xf32> to vector<8x8xf32>
    %15 = arith.mulf %10, %14 : vector<8x8xf32>
    %c0_6 = arith.constant 0 : index
    %c0_7 = arith.constant 0 : index
    %16 = vector.load %arg4[%c0_6, %c0_7] : memref<8x8xf32, #tpu.memory_space<vmem>>, vector<8x8xf32>
    tpu.vector_store %arg4[%c0_6, %c0_7], %15 {strides = array<i32>} : memref<8x8xf32, #tpu.memory_space<vmem>>, vector<8x8xf32>,
    %17 = vector.shape_cast %15 : vector<8x8xf32> to vector<8x8x1xf32>
    %18 = vector.broadcast %17 : vector<8x8x1xf32> to vector<8x8x32xf32>
    %19 = arith.mulf %18, %0 : vector<8x8x32xf32>
    %cst_8 = arith.constant dense<0.000000e+00> : vector<8x32xf32>
    %20 = vector.multi_reduction <add>, %19, %cst_8 [1] : vector<8x8x32xf32> to vector<8x32xf32>
    %c0_9 = arith.constant 0 : index
    %c0_10 = arith.constant 0 : index
    %21 = vector.load %arg3[%c0_9, %c0_10] : memref<8x32xf32, #tpu.memory_space<vmem>>, vector<8x32xf32>
    tpu.vector_store %arg3[%c0_9, %c0_10], %20 {strides = array<i32>} : memref<8x32xf32, #tpu.memory_space<vmem>>, vector<8x32xf32>,
    return
  }
  func.func @transform_0(%arg0: i32) -> (i32, i32, i32) {
    %c0_i32 = arith.constant 0 : i32
    %c0_i32_0 = arith.constant 0 : i32
    %c0_i32_1 = arith.constant 0 : i32
    return %arg0, %c0_i32, %c0_i32_0 : i32, i32, i32
  }
  func.func @transform_1(%arg0: i32) -> (i32, i32) {
    %c0_i32 = arith.constant 0 : i32
    %c0_i32_0 = arith.constant 0 : i32
    %c0_i32_1 = arith.constant 0 : i32
    return %c0_i32, %c0_i32_0 : i32, i32
  }
  func.func @transform_2(%arg0: i32) -> (i32, i32) {
    %c0_i32 = arith.constant 0 : i32
    %c0_i32_0 = arith.constant 0 : i32
    return %arg0, %c0_i32 : i32, i32
  }
  func.func @transform_3(%arg0: i32) -> (i32, i32) {
    %c0_i32 = arith.constant 0 : i32
    %c0_i32_0 = arith.constant 0 : i32
    return %arg0, %c0_i32 : i32, i32
  }
}

</mosaic_0001>

<llo_original>
// kernel: tpu_custom_call.1
$region0: #{tpu_custom_call.1}
  #allocation0 [shape = 'u32[]', space=smem, size = 0x4, offset = 0x4, fixed_abs, tag = 'smem constant byte address 0x4 - core index']
  #allocation1 [shape = 'u32[144,128]{1,0:T(1,128)}', space=vmem, size = 0x12000, scoped, tag = 'internal scratch']
  %s0 = inlined_call_operand.hbm [shape: f32[16,8,32], index: 0, kind: input, shape index: {}]
  %s1 = inlined_call_operand.vmem [shape: f32[1,32], index: 1, kind: input, shape index: {}]
  %s2 = inlined_call_operand.hbm [shape: f32[16,32], index: 2, kind: output, shape index: {0}]
  %s3 = inlined_call_operand.vmem [shape: f32[16,8], index: 3, kind: output, shape index: {1}]
  %4 = xla_tuple %s2, %s3
  %s5 = sld [smem:[#allocation0]]
  $region53: #{tpu_custom_call.1} parent=0
    _
  %s7 = ssub.s32 1, %s5
  %s8 = scalar_select 0, %s7, %s5
  $region1: #{tpu_custom_call.1} parent=0
    #allocation2 [shape = 'u8[65536]{0}', space=vmem, size = 0x10000, scoped, tag = 'input window, operand 0']
    #allocation3 [shape = 's32[2]{0}', space=sflag, size = 0x8, scoped, tag = 'scoped memory for tpu_custom_call.1']
    #allocation4 [shape = 's32[2]{0}', space=sflag, size = 0x8, scoped, tag = 'scoped memory for tpu_custom_call.1']
    #allocation5 [shape = 'u8[8192]{0}', space=vmem, size = 0x2000, scoped, tag = 'output window, operand 0']
    %9 = vsyncpa [#allocation3], 0
    %s10 = scalar_lea.sflag [#allocation3], 1
    %11 = vsyncpa %s10, 0
    %12 = vsyncpa [#allocation4], 0
    %s13 = scalar_lea.sflag [#allocation4], 1
    %14 = vsyncpa %s13, 0
    loop: start=0, step=1, limit=4
    $region2: #{tpu_custom_call.1} parent=1 // loop_pre_header
      _
    $region3: #{tpu_custom_call.1} parent=1 // loop_header
      %s16 = sphi 0, %s20
      %p17 = scmp.ge.s32.totalorder %s16, 4
      %s26 = sphi 0, %s28
      %s29 = sphi 0, %s26
      %s30 = sphi 0, %s29
      %s46 = sphi 0, %s30
      %s50 = sphi 0, %s50
      %s52 = sphi 0, %s50
      %s53 = sphi 0, %s52
      %s67 = sphi 0, %s53
      %s73 = sphi 0, %s75
      %s76 = sphi 0, %s73
      %s77 = sphi 0, %s76
      %s93 = sphi 0, %s77
      %s99 = sphi 0, %s101
      %s102 = sphi 0, %s99
      %s103 = sphi 0, %s102
      %s119 = sphi 0, %s103
    $region4: #{tpu_custom_call.1} parent=1 // loop_header_branch
      %19 = sbr.rel (%p17) target = $region8
    $region5: #{tpu_custom_call.1} parent=1 // loop_body
      %s21 = ssub.s32 %s16, 1
      %s22 = ssub.s32 %s16, 2
      %s23 = sadd.s32 %s16, 1
      %s24 = ssub.s32 %s16, %s23
      %p25 = scmp.eq.s32.totalorder %s24, 0
      %s27 = sadd.s32 %s26, 1
      %s28 = scalar_select %p25, %s26, %s27
      %p31 = pneg %p25
      %p32 = scmp.eq.s32.totalorder %s16, 1
      %p33 = por %p31, %p32
      %p34 = scmp.ne.s32.totalorder %s26, %s29
      %p35 = scmp.eq.s32.totalorder %s16, 0
      %p36 = por %p34, %p35
      %p37 = scmp.ne.s32.totalorder %s26, %s29
      %p38 = scmp.eq.s32.totalorder %s21, 1
      %p39 = por %p37, %p38
      %p40 = scmp.ne.s32.totalorder %s29, %s30
      %p41 = scmp.eq.s32.totalorder %s21, 0
      %p42 = por %p40, %p41
      %p43 = scmp.ne.s32.totalorder %s29, %s30
      %p44 = scmp.eq.s32.totalorder %s22, 1
      %p45 = por %p43, %p44
      %p47 = scmp.ne.s32.totalorder %s30, %s46
      %p48 = scmp.eq.s32.totalorder %s22, 0
      %p49 = por %p47, %p48
      %s51 = sadd.s32 %s50, 1
      %p54 = scmp.eq.s32.totalorder %s16, 1
      %p55 = scmp.ne.s32.totalorder %s50, %s52
      %p56 = scmp.eq.s32.totalorder %s16, 0
      %p57 = por %p55, %p56
      %p58 = scmp.ne.s32.totalorder %s50, %s52
      %p59 = scmp.eq.s32.totalorder %s21, 1
      %p60 = por %p58, %p59
      %p61 = scmp.ne.s32.totalorder %s52, %s53
      %p62 = scmp.eq.s32.totalorder %s21, 0
      %p63 = por %p61, %p62
      %p64 = scmp.ne.s32.totalorder %s52, %s53
      %p65 = scmp.eq.s32.totalorder %s22, 1
      %p66 = por %p64, %p65
      %p68 = scmp.ne.s32.totalorder %s53, %s67
      %p69 = scmp.eq.s32.totalorder %s22, 0
      %p70 = por %p68, %p69
      %s71 = ssub.s32 %s16, %s23
      %p72 = scmp.eq.s32.totalorder %s71, 0
      %s74 = sadd.s32 %s73, 1
      %s75 = scalar_select %p72, %s73, %s74
      %p78 = pneg %p72
      %p79 = scmp.eq.s32.totalorder %s16, 1
      %p80 = por %p78, %p79
      %p81 = scmp.ne.s32.totalorder %s73, %s76
      %p82 = scmp.eq.s32.totalorder %s16, 0
      %p83 = por %p81, %p82
      %p84 = scmp.ne.s32.totalorder %s73, %s76
      %p85 = scmp.eq.s32.totalorder %s21, 1
      %p86 = por %p84, %p85
      %p87 = scmp.ne.s32.totalorder %s76, %s77
      %p88 = scmp.eq.s32.totalorder %s21, 0
      %p89 = por %p87, %p88
      %p90 = scmp.ne.s32.totalorder %s76, %s77
      %p91 = scmp.eq.s32.totalorder %s22, 1
      %p92 = por %p90, %p91
      %p94 = scmp.ne.s32.totalorder %s77, %s93
      %p95 = scmp.eq.s32.totalorder %s22, 0
      %p96 = por %p94, %p95
      %s97 = ssub.s32 %s16, %s23
      %p98 = scmp.eq.s32.totalorder %s97, 0
      %s100 = sadd.s32 %s99, 1
      %s101 = scalar_select %p98, %s99, %s100
      %p104 = pneg %p98
      %p105 = scmp.eq.s32.totalorder %s16, 1
      %p106 = por %p104, %p105
      %p107 = scmp.ne.s32.totalorder %s99, %s102
      %p108 = scmp.eq.s32.totalorder %s16, 0
      %p109 = por %p107, %p108
      %p110 = scmp.ne.s32.totalorder %s99, %s102
      %p111 = scmp.eq.s32.totalorder %s21, 1
      %p112 = por %p110, %p111
      %p113 = scmp.ne.s32.totalorder %s102, %s103
      %p114 = scmp.eq.s32.totalorder %s21, 0
      %p115 = por %p113, %p114
      %p116 = scmp.ne.s32.totalorder %s102, %s103
      %p117 = scmp.eq.s32.totalorder %s22, 1
      %p118 = por %p116, %p117
      %p120 = scmp.ne.s32.totalorder %s103, %s119
      %p121 = scmp.eq.s32.totalorder %s22, 0
      %p122 = por %p120, %p121
      %p123 = scmp.le.s32.totalorder 1, %s16
      %p124 = scmp.lt.s32.totalorder %s16, 3
      %p125 = pnand %p123, %p124
      %p126 = pneg %p125
      // Predicated region
      $region9: #{tpu_custom_call.1} parent=5 // pred_check
        _
      $region10: #{tpu_custom_call.1} parent=5 // pred_check_branch
        %128 = sbr.rel (%p125) target = $region12
      $region11: #{tpu_custom_call.1} parent=5 // pred_region
        %s129 = ssub.s32 %s16, 1
        // Predicated region
        $region13: #{tpu_custom_call.1} parent=11 // pred_check
          %p130 = pneg %p63
        $region14: #{tpu_custom_call.1} parent=11 // pred_check_branch
          %132 = sbr.rel (%p130) target = $region16
        $region15: #{tpu_custom_call.1} parent=11 // pred_region
          _
        $region16: #{tpu_custom_call.1} parent=11 // pred_fallthru
          _
      $region12: #{tpu_custom_call.1} parent=5 // pred_fallthru
        _
      %p133 = scmp.lt.s32.totalorder %s16, 2
      // Predicated region
      $region17: #{tpu_custom_call.1} parent=5 // pred_check
        %p134 = pneg %p133
      $region18: #{tpu_custom_call.1} parent=5 // pred_check_branch
        %136 = sbr.rel (%p134) target = $region20
      $region19: #{tpu_custom_call.1} parent=5 // pred_region
        // Predicated region
        $region21: #{tpu_custom_call.1} parent=19 // pred_check
          %p137 = pneg %p36
        $region22: #{tpu_custom_call.1} parent=19 // pred_check_branch
          %139 = sbr.rel (%p137) target = $region24
        $region23: #{tpu_custom_call.1} parent=19 // pred_region
          %s140 = sand.u32 %s26, 1
          %s141 = scalar_lea.sflag [#allocation3], %s140
          %s142 = sand.u32 %s26, 1
          %s143 = smul.addr %s142, 64
          %s144 = scalar_lea.vmem [#allocation2], %s143
          %s145 = smul.u32 8, %s16
          %s147 = ssub.s32 1024, 1024
          %148 = vsyncadd %s141, %s147
          %s149 = smul.addr %s145, 128
          %s150 = scalar_lea.hbm %s0, %s149
          %s151 = sshll.u32 %s144, 4
          %s152 = int_to_ptr.vmem [resolvable:$true] %s151
          %157 = dma.hbm_to_vmem [thread:$0]  %s150, 1024, %s152, %s141, 128, 128, 8
        $region24: #{tpu_custom_call.1} parent=19 // pred_fallthru
          _
      $region20: #{tpu_custom_call.1} parent=5 // pred_fallthru
        _
      %p158 = scmp.le.s32.totalorder 1, %s16
      %p159 = scmp.lt.s32.totalorder %s16, 3
      %p160 = pnand %p158, %p159
      %p161 = pneg %p160
      // Predicated region
      $region25: #{tpu_custom_call.1} parent=5 // pred_check
        _
      $region26: #{tpu_custom_call.1} parent=5 // pred_check_branch
        %163 = sbr.rel (%p160) target = $region28
      $region27: #{tpu_custom_call.1} parent=5 // pred_region
        %s164 = ssub.s32 %s16, 1
        %s165 = sand.u32 %s29, 1
        %s166 = scalar_lea.sflag [#allocation3], %s165
        %s167 = sand.u32 %s29, 1
        %s168 = smul.addr %s167, 64
        %s169 = scalar_lea.vmem [#allocation2], %s168
        // Predicated region
        $region29: #{tpu_custom_call.1} parent=27 // pred_check
          %p170 = pneg %p42
        $region30: #{tpu_custom_call.1} parent=27 // pred_check_branch
          %172 = sbr.rel (%p170) target = $region32
        $region31: #{tpu_custom_call.1} parent=27 // pred_region
          %173 = dma.done %s166, 1024
        $region32: #{tpu_custom_call.1} parent=27 // pred_fallthru
          _
        %s174 = sand.u32 %s29, 1
        %s175 = scalar_lea.sflag [#allocation3], %s174
        %s176 = sand.u32 %s29, 1
        %s177 = smul.addr %s176, 64
        %s178 = scalar_lea.vmem [#allocation2], %s177
        %p179 = pneg %p42
        %p180 = pneg %p39
        %p181 = pneg %p63
        %p182 = pneg %p60
        %p183 = pneg %p89
        %p184 = pneg %p86
        %s185 = sand.u32 %s76, 1
        %s186 = scalar_lea.sflag [#allocation4], %s185
        %s187 = sand.u32 %s76, 1
        %s188 = smul.addr %s187, 8
        %s189 = scalar_lea.vmem [#allocation5], %s188
        %p190 = pneg %p115
        %p191 = pneg %p112
        %p192 = scmp.lt.s32.totalorder %s21, 1
        %s193 = scalar_select %p192, %s21, 1
        %s194 = smul.addr %s193, 8
        %s195 = scalar_lea.vmem %s3, %s194
        %s196 = smul.u32 8, %s21
        %p197 = scmp.lt.s32.totalorder %s21, 1
        %s198 = scalar_select %p197, %s21, 1
        %s199 = smul.addr %s198, 8
        %s200 = scalar_lea.vmem %s3, %s199
        %v201 = vld [vmem:[%s169] sm:$0xff]
        %v202 = vld [vmem:[%s169 + $0x8] sm:$0xff]
        %v203 = vld [vmem:[%s169 + $0x10] sm:$0xff]
        %v204 = vld [vmem:[%s169 + $0x18] sm:$0xff]
        %v205 = vld [vmem:[%s169 + $0x20] sm:$0xff]
        %v206 = vld [vmem:[%s169 + $0x28] sm:$0xff]
        %v207 = vld [vmem:[%s169 + $0x30] sm:$0xff]
        %v208 = vld [vmem:[%s169 + $0x38] sm:$0xff]
        %v209 = vld [vmem:[%s1] sm:$0x1]
        %v211 = vlaneseq
        %v212 = vshrl.u32 %v211, 7
        %v213 = vsub.s32 0, %v212
        %v214 = vrot.slane %v209, %v213
        %v216 = vmul.f32 %v201, %v214
        %v217 = vmul.f32 %v202, %v214
        %v218 = vmul.f32 %v203, %v214
        %v219 = vmul.f32 %v204, %v214
        %v220 = vmul.f32 %v205, %v214
        %v221 = vmul.f32 %v206, %v214
        %v222 = vmul.f32 %v207, %v214
        %v223 = vmul.f32 %v208, %v214
        %vm224 = vcmask 261120
        %v225 = vsel %vm224, %v216, 0.0
        %226 = vadd.xlane.f32.xlu0 %v225
        %v227 = vpop.xlane.xlu0 %226
        %v228 = vsel %vm224, %v217, 0.0
        %229 = vadd.xlane.f32.xlu0 %v228
        %v230 = vpop.xlane.xlu0 %229
        %v231 = vsel %vm224, %v218, 0.0
        %232 = vadd.xlane.f32.xlu0 %v231
        %v233 = vpop.xlane.xlu0 %232
        %v234 = vsel %vm224, %v219, 0.0
        %235 = vadd.xlane.f32.xlu0 %v234
        %v236 = vpop.xlane.xlu0 %235
        %v237 = vsel %vm224, %v220, 0.0
        %238 = vadd.xlane.f32.xlu0 %v237
        %v239 = vpop.xlane.xlu0 %238
        %v240 = vsel %vm224, %v221, 0.0
        %241 = vadd.xlane.f32.xlu0 %v240
        %v242 = vpop.xlane.xlu0 %241
        %v243 = vsel %vm224, %v222, 0.0
        %244 = vadd.xlane.f32.xlu0 %v243
        %v245 = vpop.xlane.xlu0 %244
        %v246 = vsel %vm224, %v223, 0.0
        %247 = vadd.xlane.f32.xlu0 %v246
        %v248 = vpop.xlane.xlu0 %247
        %v257 = vlaneseq
        %v258 = vand.u32 %v257, 127
        %v259 = vlaneseq
        %v260 = vshrl.u32 %v259, 7
        %v261 = vsub.s32 %v258, %v260
        %v262 = vrot.slane %v227, %v261
        %v263 = vlaneseq
        %v264 = vshrl.u32 %v263, 7
        %v265 = vsub.s32 %v258, %v264
        %v266 = vrot.slane %v230, %v265
        %v267 = vlaneseq
        %v268 = vshrl.u32 %v267, 7
        %v269 = vsub.s32 %v258, %v268
        %v270 = vrot.slane %v233, %v269
        %v271 = vlaneseq
        %v272 = vshrl.u32 %v271, 7
        %v273 = vsub.s32 %v258, %v272
        %v274 = vrot.slane %v236, %v273
        %v275 = vlaneseq
        %v276 = vshrl.u32 %v275, 7
        %v277 = vsub.s32 %v258, %v276
        %v278 = vrot.slane %v239, %v277
        %v279 = vlaneseq
        %v280 = vshrl.u32 %v279, 7
        %v281 = vsub.s32 %v258, %v280
        %v282 = vrot.slane %v242, %v281
        %v283 = vlaneseq
        %v284 = vshrl.u32 %v283, 7
        %v285 = vsub.s32 %v258, %v284
        %v286 = vrot.slane %v245, %v285
        %v287 = vlaneseq
        %v288 = vshrl.u32 %v287, 7
        %v289 = vsub.s32 %v258, %v288
        %v290 = vrot.slane %v248, %v289
        %vm291 = vcmask 1041409
        %v292 = vsel %vm291, %v266, %v262
        %vm293 = vcmask 1042434
        %v294 = vsel %vm293, %v270, %v292
        %vm295 = vcmask 1043459
        %v296 = vsel %vm295, %v274, %v294
        %vm297 = vcmask 1044484
        %v298 = vsel %vm297, %v278, %v296
        %vm299 = vcmask 1045509
        %v300 = vsel %vm299, %v282, %v298
        %vm301 = vcmask 1046534
        %v302 = vsel %vm301, %v286, %v300
        %vm303 = vcmask 1047559
        %v304 = vsel %vm303, %v290, %v302
        %vm306 = vcmask 64512
        %v307 = vsel %vm306, %v304, -inf
        %308 = vmax.xlane.f32.xlu0 %v307
        %v309 = vpop.xlane.xlu0 %308
        %v311 = vlaneseq
        %v312 = vshrl.u32 %v311, 7
        %v313 = vsub.s32 0, %v312
        %v314 = vrot.slane %v309, %v313
        %v315 = vlaneseq
        %v316 = vshrl.u32 %v315, 7
        %v317 = vsub.s32 1, %v316
        %v318 = vrot.slane %v309, %v317
        %v319 = vlaneseq
        %v320 = vshrl.u32 %v319, 7
        %v321 = vsub.s32 2, %v320
        %v322 = vrot.slane %v309, %v321
        %v323 = vlaneseq
        %v324 = vshrl.u32 %v323, 7
        %v325 = vsub.s32 3, %v324
        %v326 = vrot.slane %v309, %v325
        %v327 = vlaneseq
        %v328 = vshrl.u32 %v327, 7
        %v329 = vsub.s32 4, %v328
        %v330 = vrot.slane %v309, %v329
        %v331 = vlaneseq
        %v332 = vshrl.u32 %v331, 7
        %v333 = vsub.s32 5, %v332
        %v334 = vrot.slane %v309, %v333
        %v335 = vlaneseq
        %v336 = vshrl.u32 %v335, 7
        %v337 = vsub.s32 6, %v336
        %v338 = vrot.slane %v309, %v337
        %v339 = vlaneseq
        %v340 = vshrl.u32 %v339, 7
        %v341 = vsub.s32 7, %v340
        %v342 = vrot.slane %v309, %v341
        %v351 = vsub.f32 %v227, %v314
        %v352 = vsub.f32 %v230, %v318
        %v353 = vsub.f32 %v233, %v322
        %v354 = vsub.f32 %v236, %v326
        %v355 = vsub.f32 %v239, %v330
        %v356 = vsub.f32 %v242, %v334
        %v357 = vsub.f32 %v245, %v338
        %v358 = vsub.f32 %v248, %v342
        %v359 = vmul.f32 %v351, 1.442695
        %v360 = vpow.pop %v359
        %v361 = vmul.f32 %v352, 1.442695
        %v362 = vpow.pop %v361
        %v363 = vmul.f32 %v353, 1.442695
        %v364 = vpow.pop %v363
        %v365 = vmul.f32 %v354, 1.442695
        %v366 = vpow.pop %v365
        %v367 = vmul.f32 %v355, 1.442695
        %v368 = vpow.pop %v367
        %v369 = vmul.f32 %v356, 1.442695
        %v370 = vpow.pop %v369
        %v371 = vmul.f32 %v357, 1.442695
        %v372 = vpow.pop %v371
        %v373 = vmul.f32 %v358, 1.442695
        %v374 = vpow.pop %v373
        %383 = vset.pattern.permute.xlu0 0
        %384 = vperm.xlu0 %383, %v360
        %v385 = vpop.permute.xlu0 %384
        %386 = vset.pattern.permute.xlu0 0
        %387 = vperm.xlu0 %386, %v362
        %v388 = vpop.permute.xlu0 %387
        %389 = vset.pattern.permute.xlu0 0
        %390 = vperm.xlu0 %389, %v364
        %v391 = vpop.permute.xlu0 %390
        %392 = vset.pattern.permute.xlu0 0
        %393 = vperm.xlu0 %392, %v366
        %v394 = vpop.permute.xlu0 %393
        %395 = vset.pattern.permute.xlu0 0
        %396 = vperm.xlu0 %395, %v368
        %v397 = vpop.permute.xlu0 %396
        %398 = vset.pattern.permute.xlu0 0
        %399 = vperm.xlu0 %398, %v370
        %v400 = vpop.permute.xlu0 %399
        %401 = vset.pattern.permute.xlu0 0
        %402 = vperm.xlu0 %401, %v372
        %v403 = vpop.permute.xlu0 %402
        %404 = vset.pattern.permute.xlu0 0
        %405 = vperm.xlu0 %404, %v374
        %v406 = vpop.permute.xlu0 %405
        %v407 = vlaneseq
        %v408 = vshrl.u32 %v407, 7
        %v409 = vsub.s32 %v258, %v408
        %v410 = vrot.slane %v385, %v409
        %v411 = vlaneseq
        %v412 = vshrl.u32 %v411, 7
        %v413 = vsub.s32 %v258, %v412
        %v414 = vrot.slane %v388, %v413
        %v415 = vlaneseq
        %v416 = vshrl.u32 %v415, 7
        %v417 = vsub.s32 %v258, %v416
        %v418 = vrot.slane %v391, %v417
        %v419 = vlaneseq
        %v420 = vshrl.u32 %v419, 7
        %v421 = vsub.s32 %v258, %v420
        %v422 = vrot.slane %v394, %v421
        %v423 = vlaneseq
        %v424 = vshrl.u32 %v423, 7
        %v425 = vsub.s32 %v258, %v424
        %v426 = vrot.slane %v397, %v425
        %v427 = vlaneseq
        %v428 = vshrl.u32 %v427, 7
        %v429 = vsub.s32 %v258, %v428
        %v430 = vrot.slane %v400, %v429
        %v431 = vlaneseq
        %v432 = vshrl.u32 %v431, 7
        %v433 = vsub.s32 %v258, %v432
        %v434 = vrot.slane %v403, %v433
        %v435 = vlaneseq
        %v436 = vshrl.u32 %v435, 7
        %v437 = vsub.s32 %v258, %v436
        %v438 = vrot.slane %v406, %v437
        %v439 = vsel %vm291, %v414, %v410
        %v440 = vsel %vm293, %v418, %v439
        %v441 = vsel %vm295, %v422, %v440
        %v442 = vsel %vm297, %v426, %v441
        %v443 = vsel %vm299, %v430, %v442
        %v444 = vsel %vm301, %v434, %v443
        %v445 = vsel %vm303, %v438, %v444
        %v447 = vsel %vm306, %v445, 0.0
        %448 = vadd.xlane.f32.xlu0 %v447
        %v449 = vpop.xlane.xlu0 %448
        %v450 = vrcp.pop %v449
        %v452 = vlaneseq
        %v453 = vshrl.u32 %v452, 7
        %v454 = vsub.s32 0, %v453
        %v455 = vrot.slane %v450, %v454
        %v456 = vlaneseq
        %v457 = vshrl.u32 %v456, 7
        %v458 = vsub.s32 1, %v457
        %v459 = vrot.slane %v450, %v458
        %v460 = vlaneseq
        %v461 = vshrl.u32 %v460, 7
        %v462 = vsub.s32 2, %v461
        %v463 = vrot.slane %v450, %v462
        %v464 = vlaneseq
        %v465 = vshrl.u32 %v464, 7
        %v466 = vsub.s32 3, %v465
        %v467 = vrot.slane %v450, %v466
        %v468 = vlaneseq
        %v469 = vshrl.u32 %v468, 7
        %v470 = vsub.s32 4, %v469
        %v471 = vrot.slane %v450, %v470
        %v472 = vlaneseq
        %v473 = vshrl.u32 %v472, 7
        %v474 = vsub.s32 5, %v473
        %v475 = vrot.slane %v450, %v474
        %v476 = vlaneseq
        %v477 = vshrl.u32 %v476, 7
        %v478 = vsub.s32 6, %v477
        %v479 = vrot.slane %v450, %v478
        %v480 = vlaneseq
        %v481 = vshrl.u32 %v480, 7
        %v482 = vsub.s32 7, %v481
        %v483 = vrot.slane %v450, %v482
        %v492 = vmul.f32 %v360, %v455
        %v493 = vmul.f32 %v362, %v459
        %v494 = vmul.f32 %v364, %v463
        %v495 = vmul.f32 %v366, %v467
        %v496 = vmul.f32 %v368, %v471
        %v497 = vmul.f32 %v370, %v475
        %v498 = vmul.f32 %v372, %v479
        %v499 = vmul.f32 %v374, %v483
        %508 = vset.pattern.permute.xlu0 0
        %509 = vperm.xlu0 %508, %v492
        %v510 = vpop.permute.xlu0 %509
        %511 = vset.pattern.permute.xlu0 0
        %512 = vperm.xlu0 %511, %v493
        %v513 = vpop.permute.xlu0 %512
        %514 = vset.pattern.permute.xlu0 0
        %515 = vperm.xlu0 %514, %v494
        %v516 = vpop.permute.xlu0 %515
        %517 = vset.pattern.permute.xlu0 0
        %518 = vperm.xlu0 %517, %v495
        %v519 = vpop.permute.xlu0 %518
        %520 = vset.pattern.permute.xlu0 0
        %521 = vperm.xlu0 %520, %v496
        %v522 = vpop.permute.xlu0 %521
        %523 = vset.pattern.permute.xlu0 0
        %524 = vperm.xlu0 %523, %v497
        %v525 = vpop.permute.xlu0 %524
        %526 = vset.pattern.permute.xlu0 0
        %527 = vperm.xlu0 %526, %v498
        %v528 = vpop.permute.xlu0 %527
        %529 = vset.pattern.permute.xlu0 0
        %530 = vperm.xlu0 %529, %v499
        %v531 = vpop.permute.xlu0 %530
        %v532 = vlaneseq
        %v533 = vshrl.u32 %v532, 7
        %v534 = vsub.s32 %v258, %v533
        %v535 = vrot.slane %v510, %v534
        %v536 = vlaneseq
        %v537 = vshrl.u32 %v536, 7
        %v538 = vsub.s32 %v258, %v537
        %v539 = vrot.slane %v513, %v538
        %v540 = vlaneseq
        %v541 = vshrl.u32 %v540, 7
        %v542 = vsub.s32 %v258, %v541
        %v543 = vrot.slane %v516, %v542
        %v544 = vlaneseq
        %v545 = vshrl.u32 %v544, 7
        %v546 = vsub.s32 %v258, %v545
        %v547 = vrot.slane %v519, %v546
        %v548 = vlaneseq
        %v549 = vshrl.u32 %v548, 7
        %v550 = vsub.s32 %v258, %v549
        %v551 = vrot.slane %v522, %v550
        %v552 = vlaneseq
        %v553 = vshrl.u32 %v552, 7
        %v554 = vsub.s32 %v258, %v553
        %v555 = vrot.slane %v525, %v554
        %v556 = vlaneseq
        %v557 = vshrl.u32 %v556, 7
        %v558 = vsub.s32 %v258, %v557
        %v559 = vrot.slane %v528, %v558
        %v560 = vlaneseq
        %v561 = vshrl.u32 %v560, 7
        %v562 = vsub.s32 %v258, %v561
        %v563 = vrot.slane %v531, %v562
        %v564 = vsel %vm291, %v539, %v535
        %v565 = vsel %vm293, %v543, %v564
        %v566 = vsel %vm295, %v547, %v565
        %v567 = vsel %vm297, %v551, %v566
        %v568 = vsel %vm299, %v555, %v567
        %v569 = vsel %vm301, %v559, %v568
        %v570 = vsel %vm303, %v563, %v569
        %572 = vst.msk [vmem:[%s200] sm:$0xff] %vm306, %v570
        %v581 = vmul.f32 %v510, %v201
        %v582 = vmul.f32 %v513, %v202
        %v583 = vmul.f32 %v516, %v203
        %v584 = vmul.f32 %v519, %v204
        %v585 = vmul.f32 %v522, %v205
        %v586 = vmul.f32 %v525, %v206
        %v587 = vmul.f32 %v528, %v207
        %v588 = vmul.f32 %v531, %v208
        %v589 = vsel %vm224, %v581, 0.0
        %v590 = vrot.slane %v589, 4
        %v591 = vadd.f32 %v589, %v590
        %v592 = vrot.slane %v591, 2
        %v593 = vadd.f32 %v591, %v592
        %v594 = vrot.slane %v593, 1
        %v595 = vadd.f32 %v593, %v594
        %v596 = vsel %vm224, %v582, 0.0
        %v597 = vrot.slane %v596, 4
        %v598 = vadd.f32 %v596, %v597
        %v599 = vrot.slane %v598, 2
        %v600 = vadd.f32 %v598, %v599
        %v601 = vrot.slane %v600, 1
        %v602 = vadd.f32 %v600, %v601
        %v603 = vsel %vm224, %v583, 0.0
        %v604 = vrot.slane %v603, 4
        %v605 = vadd.f32 %v603, %v604
        %v606 = vrot.slane %v605, 2
        %v607 = vadd.f32 %v605, %v606
        %v608 = vrot.slane %v607, 1
        %v609 = vadd.f32 %v607, %v608
        %v610 = vsel %vm224, %v584, 0.0
        %v611 = vrot.slane %v610, 4
        %v612 = vadd.f32 %v610, %v611
        %v613 = vrot.slane %v612, 2
        %v614 = vadd.f32 %v612, %v613
        %v615 = vrot.slane %v614, 1
        %v616 = vadd.f32 %v614, %v615
        %v617 = vsel %vm224, %v585, 0.0
        %v618 = vrot.slane %v617, 4
        %v619 = vadd.f32 %v617, %v618
        %v620 = vrot.slane %v619, 2
        %v621 = vadd.f32 %v619, %v620
        %v622 = vrot.slane %v621, 1
        %v623 = vadd.f32 %v621, %v622
        %v624 = vsel %vm224, %v586, 0.0
        %v625 = vrot.slane %v624, 4
        %v626 = vadd.f32 %v624, %v625
        %v627 = vrot.slane %v626, 2
        %v628 = vadd.f32 %v626, %v627
        %v629 = vrot.slane %v628, 1
        %v630 = vadd.f32 %v628, %v629
        %v631 = vsel %vm224, %v587, 0.0
        %v632 = vrot.slane %v631, 4
        %v633 = vadd.f32 %v631, %v632
        %v634 = vrot.slane %v633, 2
        %v635 = vadd.f32 %v633, %v634
        %v636 = vrot.slane %v635, 1
        %v637 = vadd.f32 %v635, %v636
        %v638 = vsel %vm224, %v588, 0.0
        %v639 = vrot.slane %v638, 4
        %v640 = vadd.f32 %v638, %v639
        %v641 = vrot.slane %v640, 2
        %v642 = vadd.f32 %v640, %v641
        %v643 = vrot.slane %v642, 1
        %v644 = vadd.f32 %v642, %v643
        %v653 = vsel %vm291, %v602, %v595
        %v654 = vsel %vm293, %v609, %v653
        %v655 = vsel %vm295, %v616, %v654
        %v656 = vsel %vm297, %v623, %v655
        %v657 = vsel %vm299, %v630, %v656
        %v658 = vsel %vm301, %v637, %v657
        %v659 = vsel %vm303, %v644, %v658
        %661 = vst.msk [vmem:[%s189] sm:$0xff] %vm224, %v659
        %s662 = sand.u32 %s76, 1
        %s663 = scalar_lea.sflag [#allocation4], %s662
        %s664 = sand.u32 %s76, 1
        %s665 = smul.addr %s664, 8
        %s666 = scalar_lea.vmem [#allocation5], %s665
        %p667 = scmp.lt.s32.totalorder %s21, 1
        %s668 = scalar_select %p667, %s21, 1
        %s669 = smul.addr %s668, 8
        %s670 = scalar_lea.vmem %s3, %s669
        // Predicated region
        $region33: #{tpu_custom_call.1} parent=27 // pred_check
          %p671 = pneg %p86
        $region34: #{tpu_custom_call.1} parent=27 // pred_check_branch
          %673 = sbr.rel (%p671) target = $region36
        $region35: #{tpu_custom_call.1} parent=27 // pred_region
          %s675 = ssub.s32 128, 128
          %676 = vsyncadd %s663, %s675
          %s677 = smul.addr %s21, 128
          %s678 = scalar_lea.hbm %s2, %s677
          %s680 = sshll.u32 %s666, 4
          %s681 = int_to_ptr.vmem [resolvable:$true] %s680
          %683 = dma.vmem_to_hbm [thread:$0]  %s681, 128, %s678, %s663
        $region36: #{tpu_custom_call.1} parent=27 // pred_fallthru
          _
        // Predicated region
        $region37: #{tpu_custom_call.1} parent=27 // pred_check
          %p684 = pneg %p112
        $region38: #{tpu_custom_call.1} parent=27 // pred_check_branch
          %686 = sbr.rel (%p684) target = $region40
        $region39: #{tpu_custom_call.1} parent=27 // pred_region
          _
        $region40: #{tpu_custom_call.1} parent=27 // pred_fallthru
          _
      $region28: #{tpu_custom_call.1} parent=5 // pred_fallthru
        _
      %p687 = scmp.le.s32.totalorder 2, %s16
      // Predicated region
      $region41: #{tpu_custom_call.1} parent=5 // pred_check
        %p688 = pneg %p687
      $region42: #{tpu_custom_call.1} parent=5 // pred_check_branch
        %690 = sbr.rel (%p688) target = $region44
      $region43: #{tpu_custom_call.1} parent=5 // pred_region
        %s691 = ssub.s32 %s16, 2
        // Predicated region
        $region45: #{tpu_custom_call.1} parent=43 // pred_check
          %p692 = pneg %p92
        $region46: #{tpu_custom_call.1} parent=43 // pred_check_branch
          %694 = sbr.rel (%p692) target = $region48
        $region47: #{tpu_custom_call.1} parent=43 // pred_region
          %s695 = sand.u32 %s77, 1
          %s696 = scalar_lea.sflag [#allocation4], %s695
          %s697 = sand.u32 %s77, 1
          %s698 = smul.addr %s697, 8
          %s699 = scalar_lea.vmem [#allocation5], %s698
          %700 = dma.done %s696, 128
        $region48: #{tpu_custom_call.1} parent=43 // pred_fallthru
          _
        // Predicated region
        $region49: #{tpu_custom_call.1} parent=43 // pred_check
          %p701 = pneg %p118
        $region50: #{tpu_custom_call.1} parent=43 // pred_check_branch
          %703 = sbr.rel (%p701) target = $region52
        $region51: #{tpu_custom_call.1} parent=43 // pred_region
          %p704 = scmp.lt.s32.totalorder %s22, 1
          %s705 = scalar_select %p704, %s22, 1
          %s706 = smul.addr %s705, 8
          %s707 = scalar_lea.vmem %s3, %s706
        $region52: #{tpu_custom_call.1} parent=43 // pred_fallthru
          _
      $region44: #{tpu_custom_call.1} parent=5 // pred_fallthru
        _
    $region6: #{tpu_custom_call.1} parent=1 // loop_footer
      %s20 = sadd.s32 1, %s16
    $region7: #{tpu_custom_call.1} parent=1 // loop_footer_branch
      %15 = sbr.rel target = $region3
    $region8: #{tpu_custom_call.1} parent=1 // loop_exit
      _
    %708 = vsyncpa [#allocation3], 1
    %s709 = scalar_lea.sflag [#allocation3], 1
    %710 = vsyncpa %s709, 1
    %711 = vsyncpa [#allocation4], 1
    %s712 = scalar_lea.sflag [#allocation4], 1
    %713 = vsyncpa %s712, 1

</llo_original>
